<compile_context>
chip_gen: v5e
topology: v5e:2x2
jax: 0.10.0
libtpu: 0.0.40
codegen_flags: <defaults>
</compile_context>

<pallas_src>
import functools

import jax
import jax.numpy as jnp
from jax.experimental import pallas as pl
from jax.experimental.pallas import tpu as pltpu


def _tuckert_kernel(rt_ref, e1_ref, w2_ref, et_ref, out_ref, z_ref, *, de):
    # --- stage 1 (once, at entity-tile 0): core-tensor contraction on the MXU ----
    @pl.when(pl.program_id(0) == 0)
    def _():
        # (B, dr*dt) @ (dr*dt, de*de) -> (B, de*de), f32 accumulation.
        m = jnp.dot(rt_ref[...], w2_ref[...], preferred_element_type=jnp.float32)
        e1 = e1_ref[...].astype(jnp.float32)
        # z[b, j] = sum_i e1[b, i] * m[b, i*de + j]  (register accumulation, no
        # VMEM read-modify-write; avoids in-kernel reshape / batched M=1 matmul)
        z = e1[:, 0:1] * m[:, 0:de]
        for i in range(1, de):
            z = z + e1[:, i:i + 1] * m[:, i * de:(i + 1) * de]
        z_ref[...] = z

    # --- stage 2 (every entity tile): batched score matmul + sigmoid ------------
    # (B, de) @ (de, TN) -> (B, TN) on the MXU; lane-dense unmasked output store.
    scores = jnp.dot(z_ref[...], et_ref[...].astype(jnp.float32),
                     preferred_element_type=jnp.float32)
    out_ref[...] = jax.nn.sigmoid(scores)


def tuckert_forward(e1_idx, r_idx, t_idx, E, R, T, W, *, tn=128,
                    param_dtype=jnp.float32):
    ne, de = E.shape
    dr = R.shape[1]
    dt = T.shape[1]
    B = e1_idx.shape[0]

    # --- glue: embedding gathers + parameter re-layout (no heavy compute) -------
    e1 = E[e1_idx].astype(param_dtype)                                   # (B, de)
    rt = (R[r_idx][:, :, None] * T[t_idx][:, None, :]).reshape(B, dr * dt)
    rt = rt.astype(param_dtype)                                          # (B, dr*dt)
    # W2[(r,t), (i,j)] = W[r, i, j, t]  -- lane-dense last axis (de*de >= 128)
    W2 = jnp.transpose(W, (0, 3, 1, 2)).reshape(dr * dt, de * de).astype(param_dtype)
    ET = E.T.astype(param_dtype)                                         # (de, ne)

    # pad the entity axis to a multiple of the tile width (lane-dense tiles)
    ne_pad = ((ne + tn - 1) // tn) * tn
    if ne_pad != ne:
        ET = jnp.pad(ET, ((0, 0), (0, ne_pad - ne)))
    n_tiles = ne_pad // tn

    kernel = functools.partial(_tuckert_kernel, de=de)

    # TODO(synk): for production-sized core tensors (de~200, dr*dt~900) the resident
    # W2 block should additionally be tiled over its (dr*dt, de*de) axes.
    out = pl.pallas_call(
        kernel,
        out_shape=jax.ShapeDtypeStruct((B, ne_pad), jnp.float32),
        grid=(n_tiles,),
        in_specs=[
            pl.BlockSpec((B, dr * dt), lambda j: (0, 0)),        # rt   (resident)
            pl.BlockSpec((B, de), lambda j: (0, 0)),             # e1   (resident)
            pl.BlockSpec((dr * dt, de * de), lambda j: (0, 0)),  # W2   (resident)
            pl.BlockSpec((de, tn), lambda j: (0, j)),            # E^T  (streamed tiles)
        ],
        out_specs=pl.BlockSpec((B, tn), lambda j: (0, j)),       # out  (per-tile slab)
        scratch_shapes=[pltpu.VMEM((B, de), jnp.float32)],       # z carried across tiles
        compiler_params=pltpu.CompilerParams(
            # ne axis carries the z scratch (computed at tile 0) -> "arbitrary"
            dimension_semantics=("arbitrary",)),
    )(rt, e1, W2, ET)
    return out[:, :ne]


if __name__ == "__main__":
    # small, module-consistent shapes
    ne, nr, nt = 256, 12, 20          # counts of entities / relations / times
    de, dr, dt = 32, 8, 16            # embedding dims
    B = 8                             # batch

    key = jax.random.PRNGKey(0)
    kE, kR, kT, kW, kI = jax.random.split(key, 5)

    # deterministic synthetic parameters (xavier_normal_-like scales, W ~ U(-0.1, 0.1))
    E = jax.random.normal(kE, (ne, de), jnp.float32) * (2.0 / (ne + de)) ** 0.5
    R = jax.random.normal(kR, (nr, dr), jnp.float32) * (2.0 / (nr + dr)) ** 0.5
    T = jax.random.normal(kT, (nt, dt), jnp.float32) * (2.0 / (nt + dt)) ** 0.5
    W = jax.random.uniform(kW, (dr, de, de, dt), jnp.float32, -0.1, 0.1)

    k1, k2, k3 = jax.random.split(kI, 3)
    e1_idx = jax.random.randint(k1, (B,), 0, ne, dtype=jnp.int32)
    r_idx = jax.random.randint(k2, (B,), 0, nr, dtype=jnp.int32)
    t_idx = jax.random.randint(k3, (B,), 0, nt, dtype=jnp.int32)

    pred = tuckert_forward(e1_idx, r_idx, t_idx, E, R, T, W)
    pred = jax.block_until_ready(pred)

    # pure-JAX reference check
    z_ref = jnp.einsum('bi,br,bt,rijt->bj', E[e1_idx], R[r_idx], T[t_idx], W)
    pred_ref = jax.nn.sigmoid(z_ref @ E.T)
    assert pred.shape == (B, ne)
    err = float(jnp.max(jnp.abs(pred - pred_ref)))
    assert jnp.allclose(pred, pred_ref, atol=1e-4, rtol=1e-4), err

    print("KERNEL_OK")
</pallas_src>

<mosaic_0001>
module attributes {stable_mosaic.version = 11 : i64} {
  func.func @_tuckert_kernel(%arg0: i32, %arg1: memref<8x128xf32, #tpu.memory_space<vmem>>, %arg2: memref<8x32xf32, #tpu.memory_space<vmem>>, %arg3: memref<128x1024xf32, #tpu.memory_space<vmem>>, %arg4: memref<32x128xf32, #tpu.memory_space<vmem>>, %arg5: memref<8x128xf32, #tpu.memory_space<vmem>>, %arg6: memref<8x32xf32, #tpu.memory_space<vmem>>) attributes {dimension_semantics = [#tpu.dimension_semantics<arbitrary>], iteration_bounds = array<i64: 2>, scalar_prefetch = 0 : i64, scratch_operands = 1 : i64, tpu.core_type = #tpu.core_type<tc>, window_params = [{pipeline_mode = #tpu.pipeline_mode<synchronous>, transform_indices = @transform_0, window_bounds = array<i64: 8, 128>}, {pipeline_mode = #tpu.pipeline_mode<synchronous>, transform_indices = @transform_1, window_bounds = array<i64: 8, 32>}, {pipeline_mode = #tpu.pipeline_mode<synchronous>, transform_indices = @transform_2, window_bounds = array<i64: 128, 1024>}, {transform_indices = @transform_3, window_bounds = array<i64: 32, 128>}, {transform_indices = @transform_4, window_bounds = array<i64: 8, 128>}]} {
    %c0_i32 = arith.constant 0 : i32
    %0 = arith.cmpi eq, %arg0, %c0_i32 : i32
    %1 = arith.extui %0 : i1 to i32
    %c0_i32_0 = arith.constant 0 : i32
    %2 = arith.cmpi ne, %1, %c0_i32_0 : i32
    scf.if %2 {
      %c0_7 = arith.constant 0 : index
      %c0_8 = arith.constant 0 : index
      %12 = vector.load %arg1[%c0_7, %c0_8] : memref<8x128xf32, #tpu.memory_space<vmem>>, vector<8x128xf32>
      %c0_9 = arith.constant 0 : index
      %c0_10 = arith.constant 0 : index
      %13 = vector.load %arg3[%c0_9, %c0_10] : memref<128x1024xf32, #tpu.memory_space<vmem>>, vector<128x1024xf32>
      %cst_11 = arith.constant dense<0.000000e+00> : vector<8x1024xf32>
      %14 = tpu.matmul %12, %13, %cst_11 {dimension_numbers = #tpu.dot_dimension_numbers<[1], [0], [0], [1], [0, 0, 1, 1], [], []>} : vector<8x128xf32>, vector<128x1024xf32>, vector<8x1024xf32> -> vector<8x1024xf32>
      %c0_12 = arith.constant 0 : index
      %c0_13 = arith.constant 0 : index
      %15 = vector.load %arg2[%c0_12, %c0_13] : memref<8x32xf32, #tpu.memory_space<vmem>>, vector<8x32xf32>
      %16 = vector.extract_strided_slice %15 {offsets = [0, 0], sizes = [8, 1], strides = [1, 1]} : vector<8x32xf32> to vector<8x1xf32>
      %17 = vector.extract_strided_slice %14 {offsets = [0, 0], sizes = [8, 32], strides = [1, 1]} : vector<8x1024xf32> to vector<8x32xf32>
      %18 = vector.broadcast %16 : vector<8x1xf32> to vector<8x32xf32>
      %19 = arith.mulf %18, %17 : vector<8x32xf32>
      %20 = vector.extract_strided_slice %15 {offsets = [0, 1], sizes = [8, 1], strides = [1, 1]} : vector<8x32xf32> to vector<8x1xf32>
      %21 = vector.extract_strided_slice %14 {offsets = [0, 32], sizes = [8, 32], strides = [1, 1]} : vector<8x1024xf32> to vector<8x32xf32>
      %22 = vector.broadcast %20 : vector<8x1xf32> to vector<8x32xf32>
      %23 = arith.mulf %22, %21 : vector<8x32xf32>
      %24 = arith.addf %19, %23 : vector<8x32xf32>
      %25 = vector.extract_strided_slice %15 {offsets = [0, 2], sizes = [8, 1], strides = [1, 1]} : vector<8x32xf32> to vector<8x1xf32>
      %26 = vector.extract_strided_slice %14 {offsets = [0, 64], sizes = [8, 32], strides = [1, 1]} : vector<8x1024xf32> to vector<8x32xf32>
      %27 = vector.broadcast %25 : vector<8x1xf32> to vector<8x32xf32>
      %28 = arith.mulf %27, %26 : vector<8x32xf32>
      %29 = arith.addf %24, %28 : vector<8x32xf32>
      %30 = vector.extract_strided_slice %15 {offsets = [0, 3], sizes = [8, 1], strides = [1, 1]} : vector<8x32xf32> to vector<8x1xf32>
      %31 = vector.extract_strided_slice %14 {offsets = [0, 96], sizes = [8, 32], strides = [1, 1]} : vector<8x1024xf32> to vector<8x32xf32>
      %32 = vector.broadcast %30 : vector<8x1xf32> to vector<8x32xf32>
      %33 = arith.mulf %32, %31 : vector<8x32xf32>
      %34 = arith.addf %29, %33 : vector<8x32xf32>
      %35 = vector.extract_strided_slice %15 {offsets = [0, 4], sizes = [8, 1], strides = [1, 1]} : vector<8x32xf32> to vector<8x1xf32>
      %36 = vector.extract_strided_slice %14 {offsets = [0, 128], sizes = [8, 32], strides = [1, 1]} : vector<8x1024xf32> to vector<8x32xf32>
      %37 = vector.broadcast %35 : vector<8x1xf32> to vector<8x32xf32>
      %38 = arith.mulf %37, %36 : vector<8x32xf32>
      %39 = arith.addf %34, %38 : vector<8x32xf32>
      %40 = vector.extract_strided_slice %15 {offsets = [0, 5], sizes = [8, 1], strides = [1, 1]} : vector<8x32xf32> to vector<8x1xf32>
      %41 = vector.extract_strided_slice %14 {offsets = [0, 160], sizes = [8, 32], strides = [1, 1]} : vector<8x1024xf32> to vector<8x32xf32>
      %42 = vector.broadcast %40 : vector<8x1xf32> to vector<8x32xf32>
      %43 = arith.mulf %42, %41 : vector<8x32xf32>
      %44 = arith.addf %39, %43 : vector<8x32xf32>
      %45 = vector.extract_strided_slice %15 {offsets = [0, 6], sizes = [8, 1], strides = [1, 1]} : vector<8x32xf32> to vector<8x1xf32>
      %46 = vector.extract_strided_slice %14 {offsets = [0, 192], sizes = [8, 32], strides = [1, 1]} : vector<8x1024xf32> to vector<8x32xf32>
      %47 = vector.broadcast %45 : vector<8x1xf32> to vector<8x32xf32>
      %48 = arith.mulf %47, %46 : vector<8x32xf32>
      %49 = arith.addf %44, %48 : vector<8x32xf32>
      %50 = vector.extract_strided_slice %15 {offsets = [0, 7], sizes = [8, 1], strides = [1, 1]} : vector<8x32xf32> to vector<8x1xf32>
      %51 = vector.extract_strided_slice %14 {offsets = [0, 224], sizes = [8, 32], strides = [1, 1]} : vector<8x1024xf32> to vector<8x32xf32>
      %52 = vector.broadcast %50 : vector<8x1xf32> to vector<8x32xf32>
      %53 = arith.mulf %52, %51 : vector<8x32xf32>
      %54 = arith.addf %49, %53 : vector<8x32xf32>
      %55 = vector.extract_strided_slice %15 {offsets = [0, 8], sizes = [8, 1], strides = [1, 1]} : vector<8x32xf32> to vector<8x1xf32>
      %56 = vector.extract_strided_slice %14 {offsets = [0, 256], sizes = [8, 32], strides = [1, 1]} : vector<8x1024xf32> to vector<8x32xf32>
      %57 = vector.broadcast %55 : vector<8x1xf32> to vector<8x32xf32>
      %58 = arith.mulf %57, %56 : vector<8x32xf32>
      %59 = arith.addf %54, %58 : vector<8x32xf32>
      %60 = vector.extract_strided_slice %15 {offsets = [0, 9], sizes = [8, 1], strides = [1, 1]} : vector<8x32xf32> to vector<8x1xf32>
      %61 = vector.extract_strided_slice %14 {offsets = [0, 288], sizes = [8, 32], strides = [1, 1]} : vector<8x1024xf32> to vector<8x32xf32>
      %62 = vector.broadcast %60 : vector<8x1xf32> to vector<8x32xf32>
      %63 = arith.mulf %62, %61 : vector<8x32xf32>
      %64 = arith.addf %59, %63 : vector<8x32xf32>
      %65 = vector.extract_strided_slice %15 {offsets = [0, 10], sizes = [8, 1], strides = [1, 1]} : vector<8x32xf32> to vector<8x1xf32>
      %66 = vector.extract_strided_slice %14 {offsets = [0, 320], sizes = [8, 32], strides = [1, 1]} : vector<8x1024xf32> to vector<8x32xf32>
      %67 = vector.broadcast %65 : vector<8x1xf32> to vector<8x32xf32>
      %68 = arith.mulf %67, %66 : vector<8x32xf32>
      %69 = arith.addf %64, %68 : vector<8x32xf32>
      %70 = vector.extract_strided_slice %15 {offsets = [0, 11], sizes = [8, 1], strides = [1, 1]} : vector<8x32xf32> to vector<8x1xf32>
      %71 = vector.extract_strided_slice %14 {offsets = [0, 352], sizes = [8, 32], strides = [1, 1]} : vector<8x1024xf32> to vector<8x32xf32>
      %72 = vector.broadcast %70 : vector<8x1xf32> to vector<8x32xf32>
      %73 = arith.mulf %72, %71 : vector<8x32xf32>
      %74 = arith.addf %69, %73 : vector<8x32xf32>
      %75 = vector.extract_strided_slice %15 {offsets = [0, 12], sizes = [8, 1], strides = [1, 1]} : vector<8x32xf32> to vector<8x1xf32>
      %76 = vector.extract_strided_slice %14 {offsets = [0, 384], sizes = [8, 32], strides = [1, 1]} : vector<8x1024xf32> to vector<8x32xf32>
      %77 = vector.broadcast %75 : vector<8x1xf32> to vector<8x32xf32>
      %78 = arith.mulf %77, %76 : vector<8x32xf32>
      %79 = arith.addf %74, %78 : vector<8x32xf32>
      %80 = vector.extract_strided_slice %15 {offsets = [0, 13], sizes = [8, 1], strides = [1, 1]} : vector<8x32xf32> to vector<8x1xf32>
      %81 = vector.extract_strided_slice %14 {offsets = [0, 416], sizes = [8, 32], strides = [1, 1]} : vector<8x1024xf32> to vector<8x32xf32>
      %82 = vector.broadcast %80 : vector<8x1xf32> to vector<8x32xf32>
      %83 = arith.mulf %82, %81 : vector<8x32xf32>
      %84 = arith.addf %79, %83 : vector<8x32xf32>
      %85 = vector.extract_strided_slice %15 {offsets = [0, 14], sizes = [8, 1], strides = [1, 1]} : vector<8x32xf32> to vector<8x1xf32>
      %86 = vector.extract_strided_slice %14 {offsets = [0, 448], sizes = [8, 32], strides = [1, 1]} : vector<8x1024xf32> to vector<8x32xf32>
      %87 = vector.broadcast %85 : vector<8x1xf32> to vector<8x32xf32>
      %88 = arith.mulf %87, %86 : vector<8x32xf32>
      %89 = arith.addf %84, %88 : vector<8x32xf32>
      %90 = vector.extract_strided_slice %15 {offsets = [0, 15], sizes = [8, 1], strides = [1, 1]} : vector<8x32xf32> to vector<8x1xf32>
      %91 = vector.extract_strided_slice %14 {offsets = [0, 480], sizes = [8, 32], strides = [1, 1]} : vector<8x1024xf32> to vector<8x32xf32>
      %92 = vector.broadcast %90 : vector<8x1xf32> to vector<8x32xf32>
      %93 = arith.mulf %92, %91 : vector<8x32xf32>
      %94 = arith.addf %89, %93 : vector<8x32xf32>
      %95 = vector.extract_strided_slice %15 {offsets = [0, 16], sizes = [8, 1], strides = [1, 1]} : vector<8x32xf32> to vector<8x1xf32>
      %96 = vector.extract_strided_slice %14 {offsets = [0, 512], sizes = [8, 32], strides = [1, 1]} : vector<8x1024xf32> to vector<8x32xf32>
      %97 = vector.broadcast %95 : vector<8x1xf32> to vector<8x32xf32>
      %98 = arith.mulf %97, %96 : vector<8x32xf32>
      %99 = arith.addf %94, %98 : vector<8x32xf32>
      %100 = vector.extract_strided_slice %15 {offsets = [0, 17], sizes = [8, 1], strides = [1, 1]} : vector<8x32xf32> to vector<8x1xf32>
      %101 = vector.extract_strided_slice %14 {offsets = [0, 544], sizes = [8, 32], strides = [1, 1]} : vector<8x1024xf32> to vector<8x32xf32>
      %102 = vector.broadcast %100 : vector<8x1xf32> to vector<8x32xf32>
      %103 = arith.mulf %102, %101 : vector<8x32xf32>
      %104 = arith.addf %99, %103 : vector<8x32xf32>
      %105 = vector.extract_strided_slice %15 {offsets = [0, 18], sizes = [8, 1], strides = [1, 1]} : vector<8x32xf32> to vector<8x1xf32>
      %106 = vector.extract_strided_slice %14 {offsets = [0, 576], sizes = [8, 32], strides = [1, 1]} : vector<8x1024xf32> to vector<8x32xf32>
      %107 = vector.broadcast %105 : vector<8x1xf32> to vector<8x32xf32>
      %108 = arith.mulf %107, %106 : vector<8x32xf32>
      %109 = arith.addf %104, %108 : vector<8x32xf32>
      %110 = vector.extract_strided_slice %15 {offsets = [0, 19], sizes = [8, 1], strides = [1, 1]} : vector<8x32xf32> to vector<8x1xf32>
      %111 = vector.extract_strided_slice %14 {offsets = [0, 608], sizes = [8, 32], strides = [1, 1]} : vector<8x1024xf32> to vector<8x32xf32>
      %112 = vector.broadcast %110 : vector<8x1xf32> to vector<8x32xf32>
      %113 = arith.mulf %112, %111 : vector<8x32xf32>
      %114 = arith.addf %109, %113 : vector<8x32xf32>
      %115 = vector.extract_strided_slice %15 {offsets = [0, 20], sizes = [8, 1], strides = [1, 1]} : vector<8x32xf32> to vector<8x1xf32>
      %116 = vector.extract_strided_slice %14 {offsets = [0, 640], sizes = [8, 32], strides = [1, 1]} : vector<8x1024xf32> to vector<8x32xf32>
      %117 = vector.broadcast %115 : vector<8x1xf32> to vector<8x32xf32>
      %118 = arith.mulf %117, %116 : vector<8x32xf32>
      %119 = arith.addf %114, %118 : vector<8x32xf32>
      %120 = vector.extract_strided_slice %15 {offsets = [0, 21], sizes = [8, 1], strides = [1, 1]} : vector<8x32xf32> to vector<8x1xf32>
      %121 = vector.extract_strided_slice %14 {offsets = [0, 672], sizes = [8, 32], strides = [1, 1]} : vector<8x1024xf32> to vector<8x32xf32>
      %122 = vector.broadcast %120 : vector<8x1xf32> to vector<8x32xf32>
      %123 = arith.mulf %122, %121 : vector<8x32xf32>
      %124 = arith.addf %119, %123 : vector<8x32xf32>
      %125 = vector.extract_strided_slice %15 {offsets = [0, 22], sizes = [8, 1], strides = [1, 1]} : vector<8x32xf32> to vector<8x1xf32>
      %126 = vector.extract_strided_slice %14 {offsets = [0, 704], sizes = [8, 32], strides = [1, 1]} : vector<8x1024xf32> to vector<8x32xf32>
      %127 = vector.broadcast %125 : vector<8x1xf32> to vector<8x32xf32>
      %128 = arith.mulf %127, %126 : vector<8x32xf32>
      %129 = arith.addf %124, %128 : vector<8x32xf32>
      %130 = vector.extract_strided_slice %15 {offsets = [0, 23], sizes = [8, 1], strides = [1, 1]} : vector<8x32xf32> to vector<8x1xf32>
      %131 = vector.extract_strided_slice %14 {offsets = [0, 736], sizes = [8, 32], strides = [1, 1]} : vector<8x1024xf32> to vector<8x32xf32>
      %132 = vector.broadcast %130 : vector<8x1xf32> to vector<8x32xf32>
      %133 = arith.mulf %132, %131 : vector<8x32xf32>
      %134 = arith.addf %129, %133 : vector<8x32xf32>
      %135 = vector.extract_strided_slice %15 {offsets = [0, 24], sizes = [8, 1], strides = [1, 1]} : vector<8x32xf32> to vector<8x1xf32>
      %136 = vector.extract_strided_slice %14 {offsets = [0, 768], sizes = [8, 32], strides = [1, 1]} : vector<8x1024xf32> to vector<8x32xf32>
      %137 = vector.broadcast %135 : vector<8x1xf32> to vector<8x32xf32>
      %138 = arith.mulf %137, %136 : vector<8x32xf32>
      %139 = arith.addf %134, %138 : vector<8x32xf32>
      %140 = vector.extract_strided_slice %15 {offsets = [0, 25], sizes = [8, 1], strides = [1, 1]} : vector<8x32xf32> to vector<8x1xf32>
      %141 = vector.extract_strided_slice %14 {offsets = [0, 800], sizes = [8, 32], strides = [1, 1]} : vector<8x1024xf32> to vector<8x32xf32>
      %142 = vector.broadcast %140 : vector<8x1xf32> to vector<8x32xf32>
      %143 = arith.mulf %142, %141 : vector<8x32xf32>
      %144 = arith.addf %139, %143 : vector<8x32xf32>
      %145 = vector.extract_strided_slice %15 {offsets = [0, 26], sizes = [8, 1], strides = [1, 1]} : vector<8x32xf32> to vector<8x1xf32>
      %146 = vector.extract_strided_slice %14 {offsets = [0, 832], sizes = [8, 32], strides = [1, 1]} : vector<8x1024xf32> to vector<8x32xf32>
      %147 = vector.broadcast %145 : vector<8x1xf32> to vector<8x32xf32>
      %148 = arith.mulf %147, %146 : vector<8x32xf32>
      %149 = arith.addf %144, %148 : vector<8x32xf32>
      %150 = vector.extract_strided_slice %15 {offsets = [0, 27], sizes = [8, 1], strides = [1, 1]} : vector<8x32xf32> to vector<8x1xf32>
      %151 = vector.extract_strided_slice %14 {offsets = [0, 864], sizes = [8, 32], strides = [1, 1]} : vector<8x1024xf32> to vector<8x32xf32>
      %152 = vector.broadcast %150 : vector<8x1xf32> to vector<8x32xf32>
      %153 = arith.mulf %152, %151 : vector<8x32xf32>
      %154 = arith.addf %149, %153 : vector<8x32xf32>
      %155 = vector.extract_strided_slice %15 {offsets = [0, 28], sizes = [8, 1], strides = [1, 1]} : vector<8x32xf32> to vector<8x1xf32>
      %156 = vector.extract_strided_slice %14 {offsets = [0, 896], sizes = [8, 32], strides = [1, 1]} : vector<8x1024xf32> to vector<8x32xf32>
      %157 = vector.broadcast %155 : vector<8x1xf32> to vector<8x32xf32>
      %158 = arith.mulf %157, %156 : vector<8x32xf32>
      %159 = arith.addf %154, %158 : vector<8x32xf32>
      %160 = vector.extract_strided_slice %15 {offsets = [0, 29], sizes = [8, 1], strides = [1, 1]} : vector<8x32xf32> to vector<8x1xf32>
      %161 = vector.extract_strided_slice %14 {offsets = [0, 928], sizes = [8, 32], strides = [1, 1]} : vector<8x1024xf32> to vector<8x32xf32>
      %162 = vector.broadcast %160 : vector<8x1xf32> to vector<8x32xf32>
      %163 = arith.mulf %162, %161 : vector<8x32xf32>
      %164 = arith.addf %159, %163 : vector<8x32xf32>
      %165 = vector.extract_strided_slice %15 {offsets = [0, 30], sizes = [8, 1], strides = [1, 1]} : vector<8x32xf32> to vector<8x1xf32>
      %166 = vector.extract_strided_slice %14 {offsets = [0, 960], sizes = [8, 32], strides = [1, 1]} : vector<8x1024xf32> to vector<8x32xf32>
      %167 = vector.broadcast %165 : vector<8x1xf32> to vector<8x32xf32>
      %168 = arith.mulf %167, %166 : vector<8x32xf32>
      %169 = arith.addf %164, %168 : vector<8x32xf32>
      %170 = vector.extract_strided_slice %15 {offsets = [0, 31], sizes = [8, 1], strides = [1, 1]} : vector<8x32xf32> to vector<8x1xf32>
      %171 = vector.extract_strided_slice %14 {offsets = [0, 992], sizes = [8, 32], strides = [1, 1]} : vector<8x1024xf32> to vector<8x32xf32>
      %172 = vector.broadcast %170 : vector<8x1xf32> to vector<8x32xf32>
      %173 = arith.mulf %172, %171 : vector<8x32xf32>
      %174 = arith.addf %169, %173 : vector<8x32xf32>
      %c0_14 = arith.constant 0 : index
      %c0_15 = arith.constant 0 : index
      %175 = vector.load %arg6[%c0_14, %c0_15] : memref<8x32xf32, #tpu.memory_space<vmem>>, vector<8x32xf32>
      tpu.vector_store %arg6[%c0_14, %c0_15], %174 {strides = array<i32>} : memref<8x32xf32, #tpu.memory_space<vmem>>, vector<8x32xf32>,
    } else {
    }
    %c0 = arith.constant 0 : index
    %c0_1 = arith.constant 0 : index
    %3 = vector.load %arg6[%c0, %c0_1] : memref<8x32xf32, #tpu.memory_space<vmem>>, vector<8x32xf32>
    %c0_2 = arith.constant 0 : index
    %c0_3 = arith.constant 0 : index
    %4 = vector.load %arg4[%c0_2, %c0_3] : memref<32x128xf32, #tpu.memory_space<vmem>>, vector<32x128xf32>
    %cst = arith.constant dense<0.000000e+00> : vector<8x128xf32>
    %5 = tpu.matmul %3, %4, %cst {dimension_numbers = #tpu.dot_dimension_numbers<[1], [0], [0], [1], [0, 0, 1, 1], [], []>} : vector<8x32xf32>, vector<32x128xf32>, vector<8x128xf32> -> vector<8x128xf32>
    %6 = arith.negf %5 : vector<8x128xf32>
    %7 = math.exp %6 : vector<8x128xf32>
    %cst_4 = arith.constant 1.000000e+00 : f32
    %8 = vector.broadcast %cst_4 : f32 to vector<8x128xf32>
    %9 = arith.addf %8, %7 : vector<8x128xf32>
    %10 = arith.divf %8, %9 : vector<8x128xf32>
    %c0_5 = arith.constant 0 : index
    %c0_6 = arith.constant 0 : index
    %11 = vector.load %arg5[%c0_5, %c0_6] : memref<8x128xf32, #tpu.memory_space<vmem>>, vector<8x128xf32>
    tpu.vector_store %arg5[%c0_5, %c0_6], %10 {strides = array<i32>} : memref<8x128xf32, #tpu.memory_space<vmem>>, vector<8x128xf32>,
    return
  }
  func.func @transform_0(%arg0: i32) -> (i32, i32) {
    %c0_i32 = arith.constant 0 : i32
    %c0_i32_0 = arith.constant 0 : i32
    %c0_i32_1 = arith.constant 0 : i32
    return %c0_i32, %c0_i32_0 : i32, i32
  }
  func.func @transform_1(%arg0: i32) -> (i32, i32) {
    %c0_i32 = arith.constant 0 : i32
    %c0_i32_0 = arith.constant 0 : i32
    %c0_i32_1 = arith.constant 0 : i32
    return %c0_i32, %c0_i32_0 : i32, i32
  }
  func.func @transform_2(%arg0: i32) -> (i32, i32) {
    %c0_i32 = arith.constant 0 : i32
    %c0_i32_0 = arith.constant 0 : i32
    %c0_i32_1 = arith.constant 0 : i32
    return %c0_i32, %c0_i32_0 : i32, i32
  }
  func.func @transform_3(%arg0: i32) -> (i32, i32) {
    %c0_i32 = arith.constant 0 : i32
    %c0_i32_0 = arith.constant 0 : i32
    return %c0_i32, %arg0 : i32, i32
  }
  func.func @transform_4(%arg0: i32) -> (i32, i32) {
    %c0_i32 = arith.constant 0 : i32
    %c0_i32_0 = arith.constant 0 : i32
    return %c0_i32, %arg0 : i32, i32
  }
}

</mosaic_0001>

<llo_original>
// kernel: tpu_custom_call.1
$region0: #{tpu_custom_call.1}
  #allocation0 [shape = 'u32[]', space=smem, size = 0x4, offset = 0x4, fixed_abs, tag = 'smem constant byte address 0x4 - core index']
  #allocation1 [shape = 'u32[72,128]{1,0:T(1,128)}', space=vmem, size = 0x9000, scoped, tag = 'internal scratch']
  #allocation2 [shape = 'f32[8,32]{1,0:T(8,128)}', space=vmem, size = 0x1000, scoped, tag = 'scratch operand']
  %s0 = inlined_call_operand.hbm [shape: f32[8,128], index: 0, kind: input, shape index: {}]
  %s1 = inlined_call_operand.hbm [shape: f32[8,32], index: 1, kind: input, shape index: {}]
  %s2 = inlined_call_operand.hbm [shape: f32[128,1024], index: 2, kind: input, shape index: {}]
  %s3 = inlined_call_operand.hbm [shape: f32[32,256], index: 3, kind: input, shape index: {}]
  %s4 = inlined_call_operand.hbm [shape: f32[8,256], index: 4, kind: output, shape index: {}]
  %s5 = sld [smem:[#allocation0]]
  $region69: #{tpu_custom_call.1} parent=0
    _
  %s7 = ssub.s32 1, %s5
  %s8 = scalar_select 0, %s7, %s5
  $region1: #{tpu_custom_call.1} parent=0
    #allocation3 [shape = 'u8[4096]{0}', space=vmem, size = 0x1000, scoped, tag = 'input window, operand 0, single buffered']
    #allocation4 [shape = 's32[2]{0}', space=sflag, size = 0x8, scoped, tag = 'scoped memory for tpu_custom_call.1']
    #allocation5 [shape = 's32[2]{0}', space=sflag, size = 0x8, scoped, tag = 'scoped memory for tpu_custom_call.1']
    #allocation6 [shape = 'u8[4096]{0}', space=vmem, size = 0x1000, scoped, tag = 'input window, operand 1, single buffered']
    #allocation7 [shape = 's32[1]{0}', space=sflag, size = 0x4, scoped, tag = 'scoped memory for tpu_custom_call.1']
    #allocation8 [shape = 'u8[524288]{0}', space=vmem, size = 0x80000, scoped, tag = 'input window, operand 2, single buffered']
    #allocation9 [shape = 'u8[32768]{0}', space=vmem, size = 0x8000, scoped, tag = 'input window, operand 3']
    #allocation10 [shape = 's32[2]{0}', space=sflag, size = 0x8, scoped, tag = 'scoped memory for tpu_custom_call.1']
    #allocation11 [shape = 'u8[8192]{0}', space=vmem, size = 0x2000, scoped, tag = 'output window, operand 0']
    %9 = vsyncpa [#allocation4], 0
    %10 = vsyncpa [#allocation7], 0
    %11 = vsyncpa [#allocation10], 0
    %s12 = scalar_lea.sflag [#allocation10], 1
    %13 = vsyncpa %s12, 0
    %14 = vsyncpa [#allocation5], 0
    %s15 = scalar_lea.sflag [#allocation5], 1
    %16 = vsyncpa %s15, 0
    loop: start=0, step=1, limit=4
    $region2: #{tpu_custom_call.1} parent=1 // loop_pre_header
      _
    $region3: #{tpu_custom_call.1} parent=1 // loop_header
      %s18 = sphi 0, %s22
      %p19 = scmp.ge.s32.totalorder %s18, 4
      %s26 = sphi 0, %s26
      %s28 = sphi 0, %s26
      %s29 = sphi 0, %s28
      %s43 = sphi 0, %s29
      %s47 = sphi 0, %s47
      %s49 = sphi 0, %s47
      %s50 = sphi 0, %s49
      %s64 = sphi 0, %s50
      %s68 = sphi 0, %s68
      %s70 = sphi 0, %s68
      %s71 = sphi 0, %s70
      %s85 = sphi 0, %s71
      %s91 = sphi 0, %s93
      %s94 = sphi 0, %s91
      %s95 = sphi 0, %s94
      %s111 = sphi 0, %s95
      %s117 = sphi 0, %s119
      %s120 = sphi 0, %s117
      %s121 = sphi 0, %s120
      %s137 = sphi 0, %s121
    $region4: #{tpu_custom_call.1} parent=1 // loop_header_branch
      %21 = sbr.rel (%p19) target = $region8
    $region5: #{tpu_custom_call.1} parent=1 // loop_body
      %s23 = ssub.s32 %s18, 1
      %s24 = ssub.s32 %s18, 2
      %s25 = sadd.s32 %s18, 1
      %s27 = sadd.s32 %s26, 1
      %p30 = scmp.eq.s32.totalorder %s18, 1
      %p31 = scmp.ne.s32.totalorder %s26, %s28
      %p32 = scmp.eq.s32.totalorder %s18, 0
      %p33 = por %p31, %p32
      %p34 = scmp.ne.s32.totalorder %s26, %s28
      %p35 = scmp.eq.s32.totalorder %s23, 1
      %p36 = por %p34, %p35
      %p37 = scmp.ne.s32.totalorder %s28, %s29
      %p38 = scmp.eq.s32.totalorder %s23, 0
      %p39 = por %p37, %p38
      %p40 = scmp.ne.s32.totalorder %s28, %s29
      %p41 = scmp.eq.s32.totalorder %s24, 1
      %p42 = por %p40, %p41
      %p44 = scmp.ne.s32.totalorder %s29, %s43
      %p45 = scmp.eq.s32.totalorder %s24, 0
      %p46 = por %p44, %p45
      %s48 = sadd.s32 %s47, 1
      %p51 = scmp.eq.s32.totalorder %s18, 1
      %p52 = scmp.ne.s32.totalorder %s47, %s49
      %p53 = scmp.eq.s32.totalorder %s18, 0
      %p54 = por %p52, %p53
      %p55 = scmp.ne.s32.totalorder %s47, %s49
      %p56 = scmp.eq.s32.totalorder %s23, 1
      %p57 = por %p55, %p56
      %p58 = scmp.ne.s32.totalorder %s49, %s50
      %p59 = scmp.eq.s32.totalorder %s23, 0
      %p60 = por %p58, %p59
      %p61 = scmp.ne.s32.totalorder %s49, %s50
      %p62 = scmp.eq.s32.totalorder %s24, 1
      %p63 = por %p61, %p62
      %p65 = scmp.ne.s32.totalorder %s50, %s64
      %p66 = scmp.eq.s32.totalorder %s24, 0
      %p67 = por %p65, %p66
      %s69 = sadd.s32 %s68, 1
      %p72 = scmp.eq.s32.totalorder %s18, 1
      %p73 = scmp.ne.s32.totalorder %s68, %s70
      %p74 = scmp.eq.s32.totalorder %s18, 0
      %p75 = por %p73, %p74
      %p76 = scmp.ne.s32.totalorder %s68, %s70
      %p77 = scmp.eq.s32.totalorder %s23, 1
      %p78 = por %p76, %p77
      %p79 = scmp.ne.s32.totalorder %s70, %s71
      %p80 = scmp.eq.s32.totalorder %s23, 0
      %p81 = por %p79, %p80
      %p82 = scmp.ne.s32.totalorder %s70, %s71
      %p83 = scmp.eq.s32.totalorder %s24, 1
      %p84 = por %p82, %p83
      %p86 = scmp.ne.s32.totalorder %s71, %s85
      %p87 = scmp.eq.s32.totalorder %s24, 0
      %p88 = por %p86, %p87
      %s89 = ssub.s32 %s18, %s25
      %p90 = scmp.eq.s32.totalorder %s89, 0
      %s92 = sadd.s32 %s91, 1
      %s93 = scalar_select %p90, %s91, %s92
      %p96 = pneg %p90
      %p97 = scmp.eq.s32.totalorder %s18, 1
      %p98 = por %p96, %p97
      %p99 = scmp.ne.s32.totalorder %s91, %s94
      %p100 = scmp.eq.s32.totalorder %s18, 0
      %p101 = por %p99, %p100
      %p102 = scmp.ne.s32.totalorder %s91, %s94
      %p103 = scmp.eq.s32.totalorder %s23, 1
      %p104 = por %p102, %p103
      %p105 = scmp.ne.s32.totalorder %s94, %s95
      %p106 = scmp.eq.s32.totalorder %s23, 0
      %p107 = por %p105, %p106
      %p108 = scmp.ne.s32.totalorder %s94, %s95
      %p109 = scmp.eq.s32.totalorder %s24, 1
      %p110 = por %p108, %p109
      %p112 = scmp.ne.s32.totalorder %s95, %s111
      %p113 = scmp.eq.s32.totalorder %s24, 0
      %p114 = por %p112, %p113
      %s115 = ssub.s32 %s18, %s25
      %p116 = scmp.eq.s32.totalorder %s115, 0
      %s118 = sadd.s32 %s117, 1
      %s119 = scalar_select %p116, %s117, %s118
      %p122 = pneg %p116
      %p123 = scmp.eq.s32.totalorder %s18, 1
      %p124 = por %p122, %p123
      %p125 = scmp.ne.s32.totalorder %s117, %s120
      %p126 = scmp.eq.s32.totalorder %s18, 0
      %p127 = por %p125, %p126
      %p128 = scmp.ne.s32.totalorder %s117, %s120
      %p129 = scmp.eq.s32.totalorder %s23, 1
      %p130 = por %p128, %p129
      %p131 = scmp.ne.s32.totalorder %s120, %s121
      %p132 = scmp.eq.s32.totalorder %s23, 0
      %p133 = por %p131, %p132
      %p134 = scmp.ne.s32.totalorder %s120, %s121
      %p135 = scmp.eq.s32.totalorder %s24, 1
      %p136 = por %p134, %p135
      %p138 = scmp.ne.s32.totalorder %s121, %s137
      %p139 = scmp.eq.s32.totalorder %s24, 0
      %p140 = por %p138, %p139
      %p141 = scmp.le.s32.totalorder 1, %s18
      %p142 = scmp.lt.s32.totalorder %s18, 3
      %p143 = pnand %p141, %p142
      %p144 = pneg %p143
      // Predicated region
      $region9: #{tpu_custom_call.1} parent=5 // pred_check
        _
      $region10: #{tpu_custom_call.1} parent=5 // pred_check_branch
        %146 = sbr.rel (%p143) target = $region12
      $region11: #{tpu_custom_call.1} parent=5 // pred_region
        %s147 = ssub.s32 %s18, 1
        // Predicated region
        $region13: #{tpu_custom_call.1} parent=11 // pred_check
          %p148 = pneg %p39
        $region14: #{tpu_custom_call.1} parent=11 // pred_check_branch
          %150 = sbr.rel (%p148) target = $region16
        $region15: #{tpu_custom_call.1} parent=11 // pred_region
          %152 = vsyncadd [#allocation4], 0
          %s154 = sshll.u32 %s0, 4
          %s155 = int_to_ptr.hbm [resolvable:$true] %s154
          %s156 = sshll.u32 [#allocation3], 4
          %s157 = int_to_ptr.vmem [resolvable:$true] %s156
          %159 = dma.hbm_to_vmem [thread:$0]  %s155, 128, %s157, [#allocation4]
        $region16: #{tpu_custom_call.1} parent=11 // pred_fallthru
          _
        // Predicated region
        $region17: #{tpu_custom_call.1} parent=11 // pred_check
          %p160 = pneg %p60
        $region18: #{tpu_custom_call.1} parent=11 // pred_check_branch
          %162 = sbr.rel (%p160) target = $region20
        $region19: #{tpu_custom_call.1} parent=11 // pred_region
          %164 = vsyncadd [#allocation7], 0
          %s166 = sshll.u32 %s1, 4
          %s167 = int_to_ptr.hbm [resolvable:$true] %s166
          %s168 = sshll.u32 [#allocation6], 4
          %s169 = int_to_ptr.vmem [resolvable:$true] %s168
          %171 = dma.hbm_to_vmem [thread:$0]  %s167, 128, %s169, [#allocation7]
        $region20: #{tpu_custom_call.1} parent=11 // pred_fallthru
          _
        // Predicated region
        $region21: #{tpu_custom_call.1} parent=11 // pred_check
          %p172 = pneg %p81
        $region22: #{tpu_custom_call.1} parent=11 // pred_check_branch
          %174 = sbr.rel (%p172) target = $region24
        $region23: #{tpu_custom_call.1} parent=11 // pred_region
          %176 = vsyncadd [#allocation7], 0
          %s177 = sshll.u32 %s2, 4
          %s178 = int_to_ptr.hbm [resolvable:$true] %s177
          %s179 = sshll.u32 [#allocation8], 4
          %s180 = int_to_ptr.vmem [resolvable:$true] %s179
          %185 = dma.hbm_to_vmem [thread:$0]  %s178, 16384, %s180, [#allocation7], 1024, 1024, 64
        $region24: #{tpu_custom_call.1} parent=11 // pred_fallthru
          _
      $region12: #{tpu_custom_call.1} parent=5 // pred_fallthru
        _
      %p186 = scmp.lt.s32.totalorder %s18, 2
      // Predicated region
      $region25: #{tpu_custom_call.1} parent=5 // pred_check
        %p187 = pneg %p186
      $region26: #{tpu_custom_call.1} parent=5 // pred_check_branch
        %189 = sbr.rel (%p187) target = $region28
      $region27: #{tpu_custom_call.1} parent=5 // pred_region
        // Predicated region
        $region29: #{tpu_custom_call.1} parent=27 // pred_check
          %p190 = pneg %p101
        $region30: #{tpu_custom_call.1} parent=27 // pred_check_branch
          %192 = sbr.rel (%p190) target = $region32
        $region31: #{tpu_custom_call.1} parent=27 // pred_region
          %s193 = sand.u32 %s91, 1
          %s194 = scalar_lea.sflag [#allocation10], %s193
          %s195 = sand.u32 %s91, 1
          %s196 = smul.addr %s195, 32
          %s197 = scalar_lea.vmem [#allocation9], %s196
          %199 = vsyncadd %s194, 0
          %s200 = smul.addr %s18, 8
          %s201 = scalar_lea.hbm %s3, %s200
          %s202 = sshll.u32 %s201, 4
          %s203 = int_to_ptr.hbm [resolvable:$true] %s202
          %s204 = sshll.u32 %s197, 4
          %s205 = int_to_ptr.vmem [resolvable:$true] %s204
          %210 = dma.hbm_to_vmem [thread:$0]  %s203, 512, %s205, %s194, 256, 128, 8
        $region32: #{tpu_custom_call.1} parent=27 // pred_fallthru
          _
      $region28: #{tpu_custom_call.1} parent=5 // pred_fallthru
        _
      %p211 = scmp.le.s32.totalorder 1, %s18
      %p212 = scmp.lt.s32.totalorder %s18, 3
      %p213 = pnand %p211, %p212
      %p214 = pneg %p213
      // Predicated region
      $region33: #{tpu_custom_call.1} parent=5 // pred_check
        _
      $region34: #{tpu_custom_call.1} parent=5 // pred_check_branch
        %216 = sbr.rel (%p213) target = $region36
      $region35: #{tpu_custom_call.1} parent=5 // pred_region
        %s217 = ssub.s32 %s18, 1
        // Predicated region
        $region37: #{tpu_custom_call.1} parent=35 // pred_check
          %p218 = pneg %p39
        $region38: #{tpu_custom_call.1} parent=35 // pred_check_branch
          %220 = sbr.rel (%p218) target = $region40
        $region39: #{tpu_custom_call.1} parent=35 // pred_region
          %222 = dma.done [#allocation4], 128
        $region40: #{tpu_custom_call.1} parent=35 // pred_fallthru
          _
        // Predicated region
        $region41: #{tpu_custom_call.1} parent=35 // pred_check
          %p223 = pneg %p60
        $region42: #{tpu_custom_call.1} parent=35 // pred_check_branch
          %225 = sbr.rel (%p223) target = $region44
        $region43: #{tpu_custom_call.1} parent=35 // pred_region
          %227 = dma.done [#allocation7], 128
        $region44: #{tpu_custom_call.1} parent=35 // pred_fallthru
          _
        // Predicated region
        $region45: #{tpu_custom_call.1} parent=35 // pred_check
          %p228 = pneg %p81
        $region46: #{tpu_custom_call.1} parent=35 // pred_check_branch
          %230 = sbr.rel (%p228) target = $region48
        $region47: #{tpu_custom_call.1} parent=35 // pred_region
          %232 = dma.done [#allocation7], 16384
        $region48: #{tpu_custom_call.1} parent=35 // pred_fallthru
          _
        %s233 = sand.u32 %s94, 1
        %s234 = scalar_lea.sflag [#allocation10], %s233
        %s235 = sand.u32 %s94, 1
        %s236 = smul.addr %s235, 32
        %s237 = scalar_lea.vmem [#allocation9], %s236
        // Predicated region
        $region49: #{tpu_custom_call.1} parent=35 // pred_check
          %p238 = pneg %p107
        $region50: #{tpu_custom_call.1} parent=35 // pred_check_branch
          %240 = sbr.rel (%p238) target = $region52
        $region51: #{tpu_custom_call.1} parent=35 // pred_region
          %242 = dma.done %s234, 512
        $region52: #{tpu_custom_call.1} parent=35 // pred_fallthru
          _
        %p243 = pneg %p39
        %p244 = pneg %p36
        %p245 = pneg %p60
        %p246 = pneg %p57
        %p247 = pneg %p81
        %p248 = pneg %p78
        %s249 = sand.u32 %s94, 1
        %s250 = scalar_lea.sflag [#allocation10], %s249
        %s251 = sand.u32 %s94, 1
        %s252 = smul.addr %s251, 32
        %s253 = scalar_lea.vmem [#allocation9], %s252
        %p254 = pneg %p107
        %p255 = pneg %p104
        %p256 = pneg %p133
        %p257 = pneg %p130
        %s258 = sand.u32 %s120, 1
        %s259 = scalar_lea.sflag [#allocation5], %s258
        %s260 = sand.u32 %s120, 1
        %s261 = smul.addr %s260, 8
        %s262 = scalar_lea.vmem [#allocation11], %s261
        %p263 = scmp.eq.s32.totalorder %s23, 0
        // Predicated region
        $region53: #{tpu_custom_call.1} parent=35 // pred_check
          %p264 = pneg %p263
        $region54: #{tpu_custom_call.1} parent=35 // pred_check_branch
          %266 = sbr.rel (%p264) target = $region56
        $region55: #{tpu_custom_call.1} parent=35 // pred_region
          %v267 = vld [vmem:[#allocation3] sm:$0xff]
          %v268 = vld [vmem:[#allocation8] sm:$0xff]
          %v269 = vld [vmem:[#allocation8 + $0x8] sm:$0xff]
          %v270 = vld [vmem:[#allocation8 + $0x10] sm:$0xff]
          %v271 = vld [vmem:[#allocation8 + $0x18] sm:$0xff]
          %v272 = vld [vmem:[#allocation8 + $0x20] sm:$0xff]
          %v273 = vld [vmem:[#allocation8 + $0x28] sm:$0xff]
          %v274 = vld [vmem:[#allocation8 + $0x30] sm:$0xff]
          %v275 = vld [vmem:[#allocation8 + $0x38] sm:$0xff]
          %v276 = vld [vmem:[#allocation8 + $0x40] sm:$0xff]
          %v277 = vld [vmem:[#allocation8 + $0x48] sm:$0xff]
          %v278 = vld [vmem:[#allocation8 + $0x50] sm:$0xff]
          %v279 = vld [vmem:[#allocation8 + $0x58] sm:$0xff]
          %v280 = vld [vmem:[#allocation8 + $0x60] sm:$0xff]
          %v281 = vld [vmem:[#allocation8 + $0x68] sm:$0xff]
          %v282 = vld [vmem:[#allocation8 + $0x70] sm:$0xff]
          %v283 = vld [vmem:[#allocation8 + $0x78] sm:$0xff]
          %v284 = vld [vmem:[#allocation8 + $0x80] sm:$0xff]
          %v285 = vld [vmem:[#allocation8 + $0x88] sm:$0xff]
          %v286 = vld [vmem:[#allocation8 + $0x90] sm:$0xff]
          %v287 = vld [vmem:[#allocation8 + $0x98] sm:$0xff]
          %v288 = vld [vmem:[#allocation8 + $0xa0] sm:$0xff]
          %v289 = vld [vmem:[#allocation8 + $0xa8] sm:$0xff]
          %v290 = vld [vmem:[#allocation8 + $0xb0] sm:$0xff]
          %v291 = vld [vmem:[#allocation8 + $0xb8] sm:$0xff]
          %v292 = vld [vmem:[#allocation8 + $0xc0] sm:$0xff]
          %v293 = vld [vmem:[#allocation8 + $0xc8] sm:$0xff]
          %v294 = vld [vmem:[#allocation8 + $0xd0] sm:$0xff]
          %v295 = vld [vmem:[#allocation8 + $0xd8] sm:$0xff]
          %v296 = vld [vmem:[#allocation8 + $0xe0] sm:$0xff]
          %v297 = vld [vmem:[#allocation8 + $0xe8] sm:$0xff]
          %v298 = vld [vmem:[#allocation8 + $0xf0] sm:$0xff]
          %v299 = vld [vmem:[#allocation8 + $0xf8] sm:$0xff]
          %v300 = vld [vmem:[#allocation8 + $0x100] sm:$0xff]
          %v301 = vld [vmem:[#allocation8 + $0x108] sm:$0xff]
          %v302 = vld [vmem:[#allocation8 + $0x110] sm:$0xff]
          %v303 = vld [vmem:[#allocation8 + $0x118] sm:$0xff]
          %v304 = vld [vmem:[#allocation8 + $0x120] sm:$0xff]
          %v305 = vld [vmem:[#allocation8 + $0x128] sm:$0xff]
          %v306 = vld [vmem:[#allocation8 + $0x130] sm:$0xff]
          %v307 = vld [vmem:[#allocation8 + $0x138] sm:$0xff]
          %v308 = vld [vmem:[#allocation8 + $0x140] sm:$0xff]
          %v309 = vld [vmem:[#allocation8 + $0x148] sm:$0xff]
          %v310 = vld [vmem:[#allocation8 + $0x150] sm:$0xff]
          %v311 = vld [vmem:[#allocation8 + $0x158] sm:$0xff]
          %v312 = vld [vmem:[#allocation8 + $0x160] sm:$0xff]
          %v313 = vld [vmem:[#allocation8 + $0x168] sm:$0xff]
          %v314 = vld [vmem:[#allocation8 + $0x170] sm:$0xff]
          %v315 = vld [vmem:[#allocation8 + $0x178] sm:$0xff]
          %v316 = vld [vmem:[#allocation8 + $0x180] sm:$0xff]
          %v317 = vld [vmem:[#allocation8 + $0x188] sm:$0xff]
          %v318 = vld [vmem:[#allocation8 + $0x190] sm:$0xff]
          %v319 = vld [vmem:[#allocation8 + $0x198] sm:$0xff]
          %v320 = vld [vmem:[#allocation8 + $0x1a0] sm:$0xff]
          %v321 = vld [vmem:[#allocation8 + $0x1a8] sm:$0xff]
          %v322 = vld [vmem:[#allocation8 + $0x1b0] sm:$0xff]
          %v323 = vld [vmem:[#allocation8 + $0x1b8] sm:$0xff]
          %v324 = vld [vmem:[#allocation8 + $0x1c0] sm:$0xff]
          %v325 = vld [vmem:[#allocation8 + $0x1c8] sm:$0xff]
          %v326 = vld [vmem:[#allocation8 + $0x1d0] sm:$0xff]
          %v327 = vld [vmem:[#allocation8 + $0x1d8] sm:$0xff]
          %v328 = vld [vmem:[#allocation8 + $0x1e0] sm:$0xff]
          %v329 = vld [vmem:[#allocation8 + $0x1e8] sm:$0xff]
          %v330 = vld [vmem:[#allocation8 + $0x1f0] sm:$0xff]
          %v331 = vld [vmem:[#allocation8 + $0x1f8] sm:$0xff]
          %v332 = vld [vmem:[#allocation8 + $0x200] sm:$0xff]
          %v333 = vld [vmem:[#allocation8 + $0x208] sm:$0xff]
          %v334 = vld [vmem:[#allocation8 + $0x210] sm:$0xff]
          %v335 = vld [vmem:[#allocation8 + $0x218] sm:$0xff]
          %v336 = vld [vmem:[#allocation8 + $0x220] sm:$0xff]
          %v337 = vld [vmem:[#allocation8 + $0x228] sm:$0xff]
          %v338 = vld [vmem:[#allocation8 + $0x230] sm:$0xff]
          %v339 = vld [vmem:[#allocation8 + $0x238] sm:$0xff]
          %v340 = vld [vmem:[#allocation8 + $0x240] sm:$0xff]
          %v341 = vld [vmem:[#allocation8 + $0x248] sm:$0xff]
          %v342 = vld [vmem:[#allocation8 + $0x250] sm:$0xff]
          %v343 = vld [vmem:[#allocation8 + $0x258] sm:$0xff]
          %v344 = vld [vmem:[#allocation8 + $0x260] sm:$0xff]
          %v345 = vld [vmem:[#allocation8 + $0x268] sm:$0xff]
          %v346 = vld [vmem:[#allocation8 + $0x270] sm:$0xff]
          %v347 = vld [vmem:[#allocation8 + $0x278] sm:$0xff]
          %v348 = vld [vmem:[#allocation8 + $0x280] sm:$0xff]
          %v349 = vld [vmem:[#allocation8 + $0x288] sm:$0xff]
          %v350 = vld [vmem:[#allocation8 + $0x290] sm:$0xff]
          %v351 = vld [vmem:[#allocation8 + $0x298] sm:$0xff]
          %v352 = vld [vmem:[#allocation8 + $0x2a0] sm:$0xff]
          %v353 = vld [vmem:[#allocation8 + $0x2a8] sm:$0xff]
          %v354 = vld [vmem:[#allocation8 + $0x2b0] sm:$0xff]
          %v355 = vld [vmem:[#allocation8 + $0x2b8] sm:$0xff]
          %v356 = vld [vmem:[#allocation8 + $0x2c0] sm:$0xff]
          %v357 = vld [vmem:[#allocation8 + $0x2c8] sm:$0xff]
          %v358 = vld [vmem:[#allocation8 + $0x2d0] sm:$0xff]
          %v359 = vld [vmem:[#allocation8 + $0x2d8] sm:$0xff]
          %v360 = vld [vmem:[#allocation8 + $0x2e0] sm:$0xff]
          %v361 = vld [vmem:[#allocation8 + $0x2e8] sm:$0xff]
          %v362 = vld [vmem:[#allocation8 + $0x2f0] sm:$0xff]
          %v363 = vld [vmem:[#allocation8 + $0x2f8] sm:$0xff]
          %v364 = vld [vmem:[#allocation8 + $0x300] sm:$0xff]
          %v365 = vld [vmem:[#allocation8 + $0x308] sm:$0xff]
          %v366 = vld [vmem:[#allocation8 + $0x310] sm:$0xff]
          %v367 = vld [vmem:[#allocation8 + $0x318] sm:$0xff]
          %v368 = vld [vmem:[#allocation8 + $0x320] sm:$0xff]
          %v369 = vld [vmem:[#allocation8 + $0x328] sm:$0xff]
          %v370 = vld [vmem:[#allocation8 + $0x330] sm:$0xff]
          %v371 = vld [vmem:[#allocation8 + $0x338] sm:$0xff]
          %v372 = vld [vmem:[#allocation8 + $0x340] sm:$0xff]
          %v373 = vld [vmem:[#allocation8 + $0x348] sm:$0xff]
          %v374 = vld [vmem:[#allocation8 + $0x350] sm:$0xff]
          %v375 = vld [vmem:[#allocation8 + $0x358] sm:$0xff]
          %v376 = vld [vmem:[#allocation8 + $0x360] sm:$0xff]
          %v377 = vld [vmem:[#allocation8 + $0x368] sm:$0xff]
          %v378 = vld [vmem:[#allocation8 + $0x370] sm:$0xff]
          %v379 = vld [vmem:[#allocation8 + $0x378] sm:$0xff]
          %v380 = vld [vmem:[#allocation8 + $0x380] sm:$0xff]
          %v381 = vld [vmem:[#allocation8 + $0x388] sm:$0xff]
          %v382 = vld [vmem:[#allocation8 + $0x390] sm:$0xff]
          %v383 = vld [vmem:[#allocation8 + $0x398] sm:$0xff]
          %v384 = vld [vmem:[#allocation8 + $0x3a0] sm:$0xff]
          %v385 = vld [vmem:[#allocation8 + $0x3a8] sm:$0xff]
          %v386 = vld [vmem:[#allocation8 + $0x3b0] sm:$0xff]
          %v387 = vld [vmem:[#allocation8 + $0x3b8] sm:$0xff]
          %v388 = vld [vmem:[#allocation8 + $0x3c0] sm:$0xff]
          %v389 = vld [vmem:[#allocation8 + $0x3c8] sm:$0xff]
          %v390 = vld [vmem:[#allocation8 + $0x3d0] sm:$0xff]
          %v391 = vld [vmem:[#allocation8 + $0x3d8] sm:$0xff]
          %v392 = vld [vmem:[#allocation8 + $0x3e0] sm:$0xff]
          %v393 = vld [vmem:[#allocation8 + $0x3e8] sm:$0xff]
          %v394 = vld [vmem:[#allocation8 + $0x3f0] sm:$0xff]
          %v395 = vld [vmem:[#allocation8 + $0x3f8] sm:$0xff]
          %396 = vmatpush.msra.mxu0 %v388
          %397 = vmatpush.msra.mxu0 %v380
          %398 = vmatpush.msra.mxu0 %v372
          %399 = vmatpush.msra.mxu0 %v364
          %400 = vmatpush.msra.mxu0 %v356
          %401 = vmatpush.msra.mxu0 %v348
          %402 = vmatpush.msra.mxu0 %v340
          %403 = vmatpush.msra.mxu0 %v332
          %404 = vmatpush.msra.mxu0 %v324
          %405 = vmatpush.msra.mxu0 %v316
          %406 = vmatpush.msra.mxu0 %v308
          %407 = vmatpush.msra.mxu0 %v300
          %408 = vmatpush.msra.mxu0 %v292
          %409 = vmatpush.msra.mxu0 %v284
          %410 = vmatpush.msra.mxu0 %v276
          %411 = vmatpush.msra.mxu0 %v268
          %412 = vmatmul.f32.gmra.mxu0 %v267
          %v413 = vpop.f32.mrf.mxu0
          %v414 = vadd.f32 0.0, %v413
          %415 = vdwg.mxu0
          %416 = vmatpush.msra.mxu0 %v389
          %417 = vmatpush.msra.mxu0 %v381
          %418 = vmatpush.msra.mxu0 %v373
          %419 = vmatpush.msra.mxu0 %v365
          %420 = vmatpush.msra.mxu0 %v357
          %421 = vmatpush.msra.mxu0 %v349
          %422 = vmatpush.msra.mxu0 %v341
          %423 = vmatpush.msra.mxu0 %v333
          %424 = vmatpush.msra.mxu0 %v325
          %425 = vmatpush.msra.mxu0 %v317
          %426 = vmatpush.msra.mxu0 %v309
          %427 = vmatpush.msra.mxu0 %v301
          %428 = vmatpush.msra.mxu0 %v293
          %429 = vmatpush.msra.mxu0 %v285
          %430 = vmatpush.msra.mxu0 %v277
          %431 = vmatpush.msra.mxu0 %v269
          %432 = vmatmul.f32.gmra.mxu0 %v267
          %v433 = vpop.f32.mrf.mxu0
          %v434 = vadd.f32 0.0, %v433
          %435 = vdwg.mxu0
          %436 = vmatpush.msra.mxu0 %v390
          %437 = vmatpush.msra.mxu0 %v382
          %438 = vmatpush.msra.mxu0 %v374
          %439 = vmatpush.msra.mxu0 %v366
          %440 = vmatpush.msra.mxu0 %v358
          %441 = vmatpush.msra.mxu0 %v350
          %442 = vmatpush.msra.mxu0 %v342
          %443 = vmatpush.msra.mxu0 %v334
          %444 = vmatpush.msra.mxu0 %v326
          %445 = vmatpush.msra.mxu0 %v318
          %446 = vmatpush.msra.mxu0 %v310
          %447 = vmatpush.msra.mxu0 %v302
          %448 = vmatpush.msra.mxu0 %v294
          %449 = vmatpush.msra.mxu0 %v286
          %450 = vmatpush.msra.mxu0 %v278
          %451 = vmatpush.msra.mxu0 %v270
          %452 = vmatmul.f32.gmra.mxu0 %v267
          %v453 = vpop.f32.mrf.mxu0
          %v454 = vadd.f32 0.0, %v453
          %455 = vdwg.mxu0
          %456 = vmatpush.msra.mxu0 %v391
          %457 = vmatpush.msra.mxu0 %v383
          %458 = vmatpush.msra.mxu0 %v375
          %459 = vmatpush.msra.mxu0 %v367
          %460 = vmatpush.msra.mxu0 %v359
          %461 = vmatpush.msra.mxu0 %v351
          %462 = vmatpush.msra.mxu0 %v343
          %463 = vmatpush.msra.mxu0 %v335
          %464 = vmatpush.msra.mxu0 %v327
          %465 = vmatpush.msra.mxu0 %v319
          %466 = vmatpush.msra.mxu0 %v311
          %467 = vmatpush.msra.mxu0 %v303
          %468 = vmatpush.msra.mxu0 %v295
          %469 = vmatpush.msra.mxu0 %v287
          %470 = vmatpush.msra.mxu0 %v279
          %471 = vmatpush.msra.mxu0 %v271
          %472 = vmatmul.f32.gmra.mxu0 %v267
          %v473 = vpop.f32.mrf.mxu0
          %v474 = vadd.f32 0.0, %v473
          %475 = vdwg.mxu0
          %476 = vmatpush.msra.mxu0 %v392
          %477 = vmatpush.msra.mxu0 %v384
          %478 = vmatpush.msra.mxu0 %v376
          %479 = vmatpush.msra.mxu0 %v368
          %480 = vmatpush.msra.mxu0 %v360
          %481 = vmatpush.msra.mxu0 %v352
          %482 = vmatpush.msra.mxu0 %v344
          %483 = vmatpush.msra.mxu0 %v336
          %484 = vmatpush.msra.mxu0 %v328
          %485 = vmatpush.msra.mxu0 %v320
          %486 = vmatpush.msra.mxu0 %v312
          %487 = vmatpush.msra.mxu0 %v304
          %488 = vmatpush.msra.mxu0 %v296
          %489 = vmatpush.msra.mxu0 %v288
          %490 = vmatpush.msra.mxu0 %v280
          %491 = vmatpush.msra.mxu0 %v272
          %492 = vmatmul.f32.gmra.mxu0 %v267
          %v493 = vpop.f32.mrf.mxu0
          %v494 = vadd.f32 0.0, %v493
          %495 = vdwg.mxu0
          %496 = vmatpush.msra.mxu0 %v393
          %497 = vmatpush.msra.mxu0 %v385
          %498 = vmatpush.msra.mxu0 %v377
          %499 = vmatpush.msra.mxu0 %v369
          %500 = vmatpush.msra.mxu0 %v361
          %501 = vmatpush.msra.mxu0 %v353
          %502 = vmatpush.msra.mxu0 %v345
          %503 = vmatpush.msra.mxu0 %v337
          %504 = vmatpush.msra.mxu0 %v329
          %505 = vmatpush.msra.mxu0 %v321
          %506 = vmatpush.msra.mxu0 %v313
          %507 = vmatpush.msra.mxu0 %v305
          %508 = vmatpush.msra.mxu0 %v297
          %509 = vmatpush.msra.mxu0 %v289
          %510 = vmatpush.msra.mxu0 %v281
          %511 = vmatpush.msra.mxu0 %v273
          %512 = vmatmul.f32.gmra.mxu0 %v267
          %v513 = vpop.f32.mrf.mxu0
          %v514 = vadd.f32 0.0, %v513
          %515 = vdwg.mxu0
          %516 = vmatpush.msra.mxu0 %v394
          %517 = vmatpush.msra.mxu0 %v386
          %518 = vmatpush.msra.mxu0 %v378
          %519 = vmatpush.msra.mxu0 %v370
          %520 = vmatpush.msra.mxu0 %v362
          %521 = vmatpush.msra.mxu0 %v354
          %522 = vmatpush.msra.mxu0 %v346
          %523 = vmatpush.msra.mxu0 %v338
          %524 = vmatpush.msra.mxu0 %v330
          %525 = vmatpush.msra.mxu0 %v322
          %526 = vmatpush.msra.mxu0 %v314
          %527 = vmatpush.msra.mxu0 %v306
          %528 = vmatpush.msra.mxu0 %v298
          %529 = vmatpush.msra.mxu0 %v290
          %530 = vmatpush.msra.mxu0 %v282
          %531 = vmatpush.msra.mxu0 %v274
          %532 = vmatmul.f32.gmra.mxu0 %v267
          %v533 = vpop.f32.mrf.mxu0
          %v534 = vadd.f32 0.0, %v533
          %535 = vdwg.mxu0
          %536 = vmatpush.msra.mxu0 %v395
          %537 = vmatpush.msra.mxu0 %v387
          %538 = vmatpush.msra.mxu0 %v379
          %539 = vmatpush.msra.mxu0 %v371
          %540 = vmatpush.msra.mxu0 %v363
          %541 = vmatpush.msra.mxu0 %v355
          %542 = vmatpush.msra.mxu0 %v347
          %543 = vmatpush.msra.mxu0 %v339
          %544 = vmatpush.msra.mxu0 %v331
          %545 = vmatpush.msra.mxu0 %v323
          %546 = vmatpush.msra.mxu0 %v315
          %547 = vmatpush.msra.mxu0 %v307
          %548 = vmatpush.msra.mxu0 %v299
          %549 = vmatpush.msra.mxu0 %v291
          %550 = vmatpush.msra.mxu0 %v283
          %551 = vmatpush.msra.mxu0 %v275
          %552 = vmatmul.f32.gmra.mxu0 %v267
          %v553 = vpop.f32.mrf.mxu0
          %v554 = vadd.f32 0.0, %v553
          %555 = vdwg.mxu0
          %v556 = vld [vmem:[#allocation6] sm:$0xff]
          %558 = vset.pattern.permute.xlu0 0
          %559 = vperm.xlu0 %558, %v556
          %v560 = vpop.permute.xlu0 %559
          %v562 = vmul.f32 %v560, %v414
          %563 = vset.pattern.permute.xlu0 1
          %564 = vperm.xlu0 %563, %v556
          %v565 = vpop.permute.xlu0 %564
          %v567 = vmul.f32 %v565, %v414
          %569 = vrot.lane.b32.xlu0 %v567, 96
          %v570 = vpop.permute.xlu0 %569
          %v572 = vadd.f32 %v562, %v570
          %573 = vset.pattern.permute.xlu0 2
          %574 = vperm.xlu0 %573, %v556
          %v575 = vpop.permute.xlu0 %574
          %v577 = vmul.f32 %v575, %v414
          %579 = vrot.lane.b32.xlu0 %v577, 64
          %v580 = vpop.permute.xlu0 %579
          %v582 = vadd.f32 %v572, %v580
          %583 = vset.pattern.permute.xlu0 3
          %584 = vperm.xlu0 %583, %v556
          %v585 = vpop.permute.xlu0 %584
          %v587 = vmul.f32 %v585, %v414
          %589 = vrot.lane.b32.xlu0 %v587, 32
          %v590 = vpop.permute.xlu0 %589
          %v592 = vadd.f32 %v582, %v590
          %593 = vset.pattern.permute.xlu0 4
          %594 = vperm.xlu0 %593, %v556
          %v595 = vpop.permute.xlu0 %594
          %v597 = vmul.f32 %v595, %v434
          %v598 = vadd.f32 %v592, %v597
          %599 = vset.pattern.permute.xlu0 5
          %600 = vperm.xlu0 %599, %v556
          %v601 = vpop.permute.xlu0 %600
          %v603 = vmul.f32 %v601, %v434
          %605 = vrot.lane.b32.xlu0 %v603, 96
          %v606 = vpop.permute.xlu0 %605
          %v608 = vadd.f32 %v598, %v606
          %609 = vset.pattern.permute.xlu0 6
          %610 = vperm.xlu0 %609, %v556
          %v611 = vpop.permute.xlu0 %610
          %v613 = vmul.f32 %v611, %v434
          %615 = vrot.lane.b32.xlu0 %v613, 64
          %v616 = vpop.permute.xlu0 %615
          %v618 = vadd.f32 %v608, %v616
          %619 = vset.pattern.permute.xlu0 7
          %620 = vperm.xlu0 %619, %v556
          %v621 = vpop.permute.xlu0 %620
          %v623 = vmul.f32 %v621, %v434
          %625 = vrot.lane.b32.xlu0 %v623, 32
          %v626 = vpop.permute.xlu0 %625
          %v628 = vadd.f32 %v618, %v626
          %629 = vset.pattern.permute.xlu0 8
          %630 = vperm.xlu0 %629, %v556
          %v631 = vpop.permute.xlu0 %630
          %v633 = vmul.f32 %v631, %v454
          %v634 = vadd.f32 %v628, %v633
          %635 = vset.pattern.permute.xlu0 9
          %636 = vperm.xlu0 %635, %v556
          %v637 = vpop.permute.xlu0 %636
          %v639 = vmul.f32 %v637, %v454
          %641 = vrot.lane.b32.xlu0 %v639, 96
          %v642 = vpop.permute.xlu0 %641
          %v644 = vadd.f32 %v634, %v642
          %645 = vset.pattern.permute.xlu0 10
          %646 = vperm.xlu0 %645, %v556
          %v647 = vpop.permute.xlu0 %646
          %v649 = vmul.f32 %v647, %v454
          %651 = vrot.lane.b32.xlu0 %v649, 64
          %v652 = vpop.permute.xlu0 %651
          %v654 = vadd.f32 %v644, %v652
          %655 = vset.pattern.permute.xlu0 11
          %656 = vperm.xlu0 %655, %v556
          %v657 = vpop.permute.xlu0 %656
          %v659 = vmul.f32 %v657, %v454
          %661 = vrot.lane.b32.xlu0 %v659, 32
          %v662 = vpop.permute.xlu0 %661
          %v664 = vadd.f32 %v654, %v662
          %665 = vset.pattern.permute.xlu0 12
          %666 = vperm.xlu0 %665, %v556
          %v667 = vpop.permute.xlu0 %666
          %v669 = vmul.f32 %v667, %v474
          %v670 = vadd.f32 %v664, %v669
          %671 = vset.pattern.permute.xlu0 13
          %672 = vperm.xlu0 %671, %v556
          %v673 = vpop.permute.xlu0 %672
          %v675 = vmul.f32 %v673, %v474
          %677 = vrot.lane.b32.xlu0 %v675, 96
          %v678 = vpop.permute.xlu0 %677
          %v680 = vadd.f32 %v670, %v678
          %681 = vset.pattern.permute.xlu0 14
          %682 = vperm.xlu0 %681, %v556
          %v683 = vpop.permute.xlu0 %682
          %v685 = vmul.f32 %v683, %v474
          %687 = vrot.lane.b32.xlu0 %v685, 64
          %v688 = vpop.permute.xlu0 %687
          %v690 = vadd.f32 %v680, %v688
          %691 = vset.pattern.permute.xlu0 15
          %692 = vperm.xlu0 %691, %v556
          %v693 = vpop.permute.xlu0 %692
          %v695 = vmul.f32 %v693, %v474
          %697 = vrot.lane.b32.xlu0 %v695, 32
          %v698 = vpop.permute.xlu0 %697
          %v700 = vadd.f32 %v690, %v698
          %701 = vset.pattern.permute.xlu0 16
          %702 = vperm.xlu0 %701, %v556
          %v703 = vpop.permute.xlu0 %702
          %v705 = vmul.f32 %v703, %v494
          %v706 = vadd.f32 %v700, %v705
          %707 = vset.pattern.permute.xlu0 17
          %708 = vperm.xlu0 %707, %v556
          %v709 = vpop.permute.xlu0 %708
          %v711 = vmul.f32 %v709, %v494
          %713 = vrot.lane.b32.xlu0 %v711, 96
          %v714 = vpop.permute.xlu0 %713
          %v716 = vadd.f32 %v706, %v714
          %717 = vset.pattern.permute.xlu0 18
          %718 = vperm.xlu0 %717, %v556
          %v719 = vpop.permute.xlu0 %718
          %v721 = vmul.f32 %v719, %v494
          %723 = vrot.lane.b32.xlu0 %v721, 64
          %v724 = vpop.permute.xlu0 %723
          %v726 = vadd.f32 %v716, %v724
          %727 = vset.pattern.permute.xlu0 19
          %728 = vperm.xlu0 %727, %v556
          %v729 = vpop.permute.xlu0 %728
          %v731 = vmul.f32 %v729, %v494
          %733 = vrot.lane.b32.xlu0 %v731, 32
          %v734 = vpop.permute.xlu0 %733
          %v736 = vadd.f32 %v726, %v734
          %737 = vset.pattern.permute.xlu0 20
          %738 = vperm.xlu0 %737, %v556
          %v739 = vpop.permute.xlu0 %738
          %v741 = vmul.f32 %v739, %v514
          %v742 = vadd.f32 %v736, %v741
          %743 = vset.pattern.permute.xlu0 21
          %744 = vperm.xlu0 %743, %v556
          %v745 = vpop.permute.xlu0 %744
          %v747 = vmul.f32 %v745, %v514
          %749 = vrot.lane.b32.xlu0 %v747, 96
          %v750 = vpop.permute.xlu0 %749
          %v752 = vadd.f32 %v742, %v750
          %753 = vset.pattern.permute.xlu0 22
          %754 = vperm.xlu0 %753, %v556
          %v755 = vpop.permute.xlu0 %754
          %v757 = vmul.f32 %v755, %v514
          %759 = vrot.lane.b32.xlu0 %v757, 64
          %v760 = vpop.permute.xlu0 %759
          %v762 = vadd.f32 %v752, %v760
          %763 = vset.pattern.permute.xlu0 23
          %764 = vperm.xlu0 %763, %v556
          %v765 = vpop.permute.xlu0 %764
          %v767 = vmul.f32 %v765, %v514
          %769 = vrot.lane.b32.xlu0 %v767, 32
          %v770 = vpop.permute.xlu0 %769
          %v772 = vadd.f32 %v762, %v770
          %773 = vset.pattern.permute.xlu0 24
          %774 = vperm.xlu0 %773, %v556
          %v775 = vpop.permute.xlu0 %774
          %v777 = vmul.f32 %v775, %v534
          %v778 = vadd.f32 %v772, %v777
          %779 = vset.pattern.permute.xlu0 25
          %780 = vperm.xlu0 %779, %v556
          %v781 = vpop.permute.xlu0 %780
          %v783 = vmul.f32 %v781, %v534
          %785 = vrot.lane.b32.xlu0 %v783, 96
          %v786 = vpop.permute.xlu0 %785
          %v788 = vadd.f32 %v778, %v786
          %789 = vset.pattern.permute.xlu0 26
          %790 = vperm.xlu0 %789, %v556
          %v791 = vpop.permute.xlu0 %790
          %v793 = vmul.f32 %v791, %v534
          %795 = vrot.lane.b32.xlu0 %v793, 64
          %v796 = vpop.permute.xlu0 %795
          %v798 = vadd.f32 %v788, %v796
          %799 = vset.pattern.permute.xlu0 27
          %800 = vperm.xlu0 %799, %v556
          %v801 = vpop.permute.xlu0 %800
          %v803 = vmul.f32 %v801, %v534
          %805 = vrot.lane.b32.xlu0 %v803, 32
          %v806 = vpop.permute.xlu0 %805
          %v808 = vadd.f32 %v798, %v806
          %809 = vset.pattern.permute.xlu0 28
          %810 = vperm.xlu0 %809, %v556
          %v811 = vpop.permute.xlu0 %810
          %v813 = vmul.f32 %v811, %v554
          %v814 = vadd.f32 %v808, %v813
          %815 = vset.pattern.permute.xlu0 29
          %816 = vperm.xlu0 %815, %v556
          %v817 = vpop.permute.xlu0 %816
          %v819 = vmul.f32 %v817, %v554
          %821 = vrot.lane.b32.xlu0 %v819, 96
          %v822 = vpop.permute.xlu0 %821
          %v824 = vadd.f32 %v814, %v822
          %825 = vset.pattern.permute.xlu0 30
          %826 = vperm.xlu0 %825, %v556
          %v827 = vpop.permute.xlu0 %826
          %v829 = vmul.f32 %v827, %v554
          %831 = vrot.lane.b32.xlu0 %v829, 64
          %v832 = vpop.permute.xlu0 %831
          %v834 = vadd.f32 %v824, %v832
          %835 = vset.pattern.permute.xlu0 31
          %836 = vperm.xlu0 %835, %v556
          %v837 = vpop.permute.xlu0 %836
          %v839 = vmul.f32 %v837, %v554
          %841 = vrot.lane.b32.xlu0 %v839, 32
          %v842 = vpop.permute.xlu0 %841
          %v844 = vadd.f32 %v834, %v842
          %vm845 = vcmask 261120
          %846 = vst.msk [vmem:[#allocation2] sm:$0xff] %vm845, %v844
        $region56: #{tpu_custom_call.1} parent=35 // pred_fallthru
          _
        %v847 = vld [vmem:[#allocation2] sm:$0xff]
        %v848 = vld [vmem:[%s237] sm:$0xff]
        %v849 = vld [vmem:[%s237 + $0x8] sm:$0xff]
        %v850 = vld [vmem:[%s237 + $0x10] sm:$0xff]
        %v851 = vld [vmem:[%s237 + $0x18] sm:$0xff]
        %vm852 = vcmask 261120
        %v854 = vsel %vm852, %v847, 0
        %856 = vmatpush.msra.mxu0 0.0
        %857 = vmatpush.msra.mxu0 0.0
        %858 = vmatpush.msra.mxu0 0.0
        %859 = vmatpush.msra.mxu0 0.0
        %860 = vmatpush.msra.mxu0 0.0
        %861 = vmatpush.msra.mxu0 0.0
        %862 = vmatpush.msra.mxu0 0.0
        %863 = vmatpush.msra.mxu0 0.0
        %864 = vmatpush.msra.mxu0 0.0
        %865 = vmatpush.msra.mxu0 0.0
        %866 = vmatpush.msra.mxu0 0.0
        %867 = vmatpush.msra.mxu0 0.0
        %868 = vmatpush.msra.mxu0 %v851
        %869 = vmatpush.msra.mxu0 %v850
        %870 = vmatpush.msra.mxu0 %v849
        %871 = vmatpush.msra.mxu0 %v848
        %872 = vmatmul.f32.gmra.mxu0 %v854
        %v873 = vpop.f32.mrf.mxu0
        %v874 = vadd.f32 0.0, %v873
        %875 = vdwg.mxu0
        %v876 = vxor.u32 %v874, 2147483648
        %v877 = vmul.f32 %v876, 1.442695
        %v878 = vpow.pop %v877
        %v879 = vadd.f32 %v878, 1.0
        %v880 = vrcp.pop %v879
        %v881 = vmul.f32 %v879, %v880
        %v882 = vsub.f32 1.0, %v881
        %v883 = vmul.f32 %v880, %v882
        %v884 = vadd.f32 %v880, %v883
        %vm885 = vweird.f32 %v879
        %vm886 = vweird.f32 %v880
        %vm887 = vmor %vm885, %vm886
        %v888 = vsel %vm887, %v880, %v884
        %v889 = vand.u32 2147483647, %v879
        %vm890 = vcmp.eq.f32.partialorder %v889, 8.507059e+37
        %v891 = vand.u32 %v879, 2147483648
        %v892 = vor.u32 1.1754944e-38, %v891
        %v893 = vsel %vm890, %v892, %v888
        %v894 = vmul.f32 1.0, %v893
        %895 = vst [vmem:[%s262] sm:$0xff] %v894
        %s896 = sand.u32 %s120, 1
        %s897 = scalar_lea.sflag [#allocation5], %s896
        %s898 = sand.u32 %s120, 1
        %s899 = smul.addr %s898, 8
        %s900 = scalar_lea.vmem [#allocation11], %s899
        // Predicated region
        $region57: #{tpu_custom_call.1} parent=35 // pred_check
          %p901 = pneg %p130
        $region58: #{tpu_custom_call.1} parent=35 // pred_check_branch
          %903 = sbr.rel (%p901) target = $region60
        $region59: #{tpu_custom_call.1} parent=35 // pred_region
          %905 = vsyncadd %s897, 0
          %s906 = smul.addr %s23, 8
          %s907 = scalar_lea.hbm %s4, %s906
          %s909 = sshll.u32 %s900, 4
          %s910 = int_to_ptr.vmem [resolvable:$true] %s909
          %s911 = sshll.u32 %s907, 4
          %s912 = int_to_ptr.hbm [resolvable:$true] %s911
          %914 = dma.vmem_to_hbm [thread:$0]  %s910, 128, %s912, %s897
        $region60: #{tpu_custom_call.1} parent=35 // pred_fallthru
          _
      $region36: #{tpu_custom_call.1} parent=5 // pred_fallthru
        _
      %p915 = scmp.le.s32.totalorder 2, %s18
      // Predicated region
      $region61: #{tpu_custom_call.1} parent=5 // pred_check
        %p916 = pneg %p915
      $region62: #{tpu_custom_call.1} parent=5 // pred_check_branch
        %918 = sbr.rel (%p916) target = $region64
      $region63: #{tpu_custom_call.1} parent=5 // pred_region
        %s919 = ssub.s32 %s18, 2
        // Predicated region
        $region65: #{tpu_custom_call.1} parent=63 // pred_check
          %p920 = pneg %p136
        $region66: #{tpu_custom_call.1} parent=63 // pred_check_branch
          %922 = sbr.rel (%p920) target = $region68
        $region67: #{tpu_custom_call.1} parent=63 // pred_region
          %s923 = sand.u32 %s121, 1
          %s924 = scalar_lea.sflag [#allocation5], %s923
          %s925 = sand.u32 %s121, 1
          %s926 = smul.addr %s925, 8
          %s927 = scalar_lea.vmem [#allocation11], %s926
          %929 = dma.done %s924, 128
        $region68: #{tpu_custom_call.1} parent=63 // pred_fallthru
          _
      $region64: #{tpu_custom_call.1} parent=5 // pred_fallthru
        _
    $region6: #{tpu_custom_call.1} parent=1 // loop_footer
      %s22 = sadd.s32 1, %s18
    $region7: #{tpu_custom_call.1} parent=1 // loop_footer_branch
      %17 = sbr.rel target = $region3
    $region8: #{tpu_custom_call.1} parent=1 // loop_exit
      _
    %930 = vsyncpa [#allocation4], 1
    %s931 = scalar_lea.sflag [#allocation4], 1
    %932 = vsyncpa %s931, 1
    %933 = vsyncpa [#allocation7], 1
    %934 = vsyncpa [#allocation10], 1
    %s935 = scalar_lea.sflag [#allocation10], 1
    %936 = vsyncpa %s935, 1
    %937 = vsyncpa [#allocation5], 1
    %s938 = scalar_lea.sflag [#allocation5], 1
    %939 = vsyncpa %s938, 1

</llo_original>
